<compile_context>
chip_gen: v7x
topology: tpu7x:2x2x1
jax: 0.10.0
libtpu: 0.0.40
codegen_flags: <defaults>
</compile_context>

<pallas_src>
import functools
import math

import jax
import jax.numpy as jnp
from jax.experimental import pallas as pl
from jax.experimental.pallas import tpu as pltpu


def hs_kernel(x_ref, w_ref, b_ref, adj_ref, hs_ref, r_ref):
    """Per row tile: h = x @ W_fused + b, r = rsqrt(rowsum(adj)+1), hs = r*h."""
    h = jnp.dot(x_ref[...], w_ref[...],
                preferred_element_type=jnp.float32) + b_ref[...]
    # rowsum of (adj + I) for this row tile == rowsum(adj) + 1  (no eye needed)
    rowsum = jnp.sum(adj_ref[...], axis=1, keepdims=True) + 1.0
    r = jax.lax.rsqrt(rowsum)                       # EUP, free under the MXU
    r = jnp.where(jnp.isinf(r), 0.0, r)             # matches torch isinf guard
    r_ref[...] = r
    hs_ref[...] = r * h


def agg_kernel(adj_ref, hs_full_ref, r_ref, out_ref, *, tm):
    """Per row tile: out = r_tile * (adj_tile @ hs + hs_tile)."""
    i = pl.program_id(0)
    row0 = pl.multiple_of(i * tm, tm)
    hs_tile = hs_full_ref[pl.ds(row0, tm), :]       # f32 (tm, f_pad)
    # Dominant matmul in bf16 (adj is 0/1 -> exact), f32 accumulation on MXU.
    agg = jnp.dot(adj_ref[...].astype(jnp.bfloat16),
                  hs_full_ref[...].astype(jnp.bfloat16),
                  preferred_element_type=jnp.float32)
    out_ref[...] = r_ref[...] * (agg + hs_tile)


def gcn_layer(x, adj, w1, b1, w2, b2, *, tm=128):
    n, f_in = x.shape
    f_out = w2.shape[1]
    f_pad = ((f_out + 127) // 128) * 128            # lane-dense output stores

    # Fuse the two bias-linears offline (exactly equivalent: no nonlinearity).
    w = jnp.pad(w1 @ w2, ((0, 0), (0, f_pad - f_out)))        # (f_in, f_pad)
    b = jnp.pad(b1 @ w2 + b2, ((0, 0), (0, f_pad - f_out)))   # (1, f_pad)

    tm = min(tm, n)
    assert n % tm == 0, "node count must be divisible by the row tile"
    grid = (n // tm,)
    params = pltpu.CompilerParams(
        dimension_semantics=("parallel",),          # shard row tiles across TCs
        vmem_limit_bytes=32 * 1024 * 1024,
    )

    # Pass 1: hs = r * (x @ W + b), r per row tile (streams adj row tiles).
    hs, r = pl.pallas_call(
        hs_kernel,
        grid=grid,
        in_specs=[
            pl.BlockSpec((tm, f_in), lambda i: (i, 0)),
            pl.BlockSpec((f_in, f_pad), lambda i: (0, 0)),
            pl.BlockSpec((1, f_pad), lambda i: (0, 0)),
            pl.BlockSpec((tm, n), lambda i: (i, 0)),
        ],
        out_specs=[
            pl.BlockSpec((tm, f_pad), lambda i: (i, 0)),
            pl.BlockSpec((tm, 1), lambda i: (i, 0)),
        ],
        out_shape=[
            jax.ShapeDtypeStruct((n, f_pad), jnp.float32),
            jax.ShapeDtypeStruct((n, 1), jnp.float32),
        ],
        compiler_params=params,
    )(x, w, b, adj)

    # Pass 2: out = r * (adj @ hs + hs_tile); adj streamed, hs kept resident.
    # TODO(synk): for very large N, tile hs along rows too instead of keeping
    # the full (N, f_pad) block resident in VMEM.
    out = pl.pallas_call(
        functools.partial(agg_kernel, tm=tm),
        grid=grid,
        in_specs=[
            pl.BlockSpec((tm, n), lambda i: (i, 0)),
            pl.BlockSpec((n, f_pad), lambda i: (0, 0)),   # resident across grid
            pl.BlockSpec((tm, 1), lambda i: (i, 0)),
        ],
        out_specs=pl.BlockSpec((tm, f_pad), lambda i: (i, 0)),
        out_shape=jax.ShapeDtypeStruct((n, f_pad), jnp.float32),
        compiler_params=params,
    )(adj, hs, r)

    return out[:, :f_out]


def init_params(key, in_features, out_features):
    """Deterministic parameter init matching GCNLayer.__init__ shapes.

    linear_1: in_features -> out_features // 2   (kaiming_normal_ on weight)
    linear_2: out_features // 2 -> out_features
    Weights are stored already transposed: (fan_in, fan_out).
    """
    hidden = out_features // 2
    k1, k2, k3, k4 = jax.random.split(key, 4)
    w1 = jax.random.normal(k1, (in_features, hidden), jnp.float32) * math.sqrt(
        2.0 / in_features)
    w2 = jax.random.normal(k2, (hidden, out_features), jnp.float32) * math.sqrt(
        2.0 / hidden)
    b1 = jax.random.uniform(k3, (1, hidden), jnp.float32,
                            -1.0 / math.sqrt(in_features),
                            1.0 / math.sqrt(in_features))
    b2 = jax.random.uniform(k4, (1, out_features), jnp.float32,
                            -1.0 / math.sqrt(hidden),
                            1.0 / math.sqrt(hidden))
    return w1, b1, w2, b2


if __name__ == "__main__":
    N = 256            # number of graph nodes (2 row tiles of 128)
    IN_FEATURES = 16
    OUT_FEATURES = 32

    key = jax.random.PRNGKey(0)
    kx, kadj, kp = jax.random.split(key, 3)

    x = jax.random.normal(kx, (N, IN_FEATURES), jnp.float32)
    # 0/1 adjacency (thresholded similarity graph), symmetrized.
    a = (jax.random.uniform(kadj, (N, N), jnp.float32) > 0.5).astype(jnp.float32)
    adj = jnp.maximum(a, a.T)

    w1, b1, w2, b2 = init_params(kp, IN_FEATURES, OUT_FEATURES)

    out = gcn_layer(x, adj, w1, b1, w2, b2, tm=128)
    jax.block_until_ready(out)

    # Pure-JAX f32 reference with the original (unfused) math.
    h = x @ w1 + b1
    h = h @ w2 + b2
    adj_hat = adj + jnp.eye(N, dtype=jnp.float32)
    r_ref = adj_hat.sum(1) ** -0.5
    r_ref = jnp.where(jnp.isinf(r_ref), 0.0, r_ref)
    adj_norm = jnp.diag(r_ref) @ adj_hat @ jnp.diag(r_ref)
    ref = adj_norm @ h

    assert out.shape == (N, OUT_FEATURES)
    # bf16 is used only for the dominant adj @ hs matmul -> loosened tolerance.
    assert jnp.allclose(out, ref, atol=2e-2, rtol=2e-2), float(
        jnp.max(jnp.abs(out - ref)))

    print("KERNEL_OK")
</pallas_src>

<mosaic_0001>
module attributes {stable_mosaic.version = 11 : i64} {
  func.func @hs_kernel(%arg0: i32, %arg1: memref<128x16xf32, #tpu.memory_space<vmem>>, %arg2: memref<16x128xf32, #tpu.memory_space<vmem>>, %arg3: memref<1x128xf32, #tpu.memory_space<vmem>>, %arg4: memref<128x256xf32, #tpu.memory_space<vmem>>, %arg5: memref<128x128xf32, #tpu.memory_space<vmem>>, %arg6: memref<128x1xf32, #tpu.memory_space<vmem>>) attributes {dimension_semantics = [#tpu.dimension_semantics<parallel>], iteration_bounds = array<i64: 2>, scalar_prefetch = 0 : i64, scratch_operands = 0 : i64, tpu.core_type = #tpu.core_type<tc>, window_params = [{transform_indices = @transform_0, window_bounds = array<i64: 128, 16>}, {pipeline_mode = #tpu.pipeline_mode<synchronous>, transform_indices = @transform_1, window_bounds = array<i64: 16, 128>}, {pipeline_mode = #tpu.pipeline_mode<synchronous>, transform_indices = @transform_2, window_bounds = array<i64: 1, 128>}, {transform_indices = @transform_3, window_bounds = array<i64: 128, 256>}, {transform_indices = @transform_4, window_bounds = array<i64: 128, 128>}, {transform_indices = @transform_5, window_bounds = array<i64: 128, 1>}]} {
    %c0 = arith.constant 0 : index
    %c0_0 = arith.constant 0 : index
    %0 = vector.load %arg1[%c0, %c0_0] : memref<128x16xf32, #tpu.memory_space<vmem>>, vector<128x16xf32>
    %c0_1 = arith.constant 0 : index
    %c0_2 = arith.constant 0 : index
    %1 = vector.load %arg2[%c0_1, %c0_2] : memref<16x128xf32, #tpu.memory_space<vmem>>, vector<16x128xf32>
    %cst = arith.constant dense<0.000000e+00> : vector<128x128xf32>
    %2 = tpu.matmul %0, %1, %cst {dimension_numbers = #tpu.dot_dimension_numbers<[1], [0], [0], [1], [0, 0, 1, 1], [], []>} : vector<128x16xf32>, vector<16x128xf32>, vector<128x128xf32> -> vector<128x128xf32>
    %c0_3 = arith.constant 0 : index
    %c0_4 = arith.constant 0 : index
    %3 = vector.load %arg3[%c0_3, %c0_4] : memref<1x128xf32, #tpu.memory_space<vmem>>, vector<1x128xf32>
    %4 = vector.broadcast %3 : vector<1x128xf32> to vector<128x128xf32>
    %5 = arith.addf %2, %4 : vector<128x128xf32>
    %c0_5 = arith.constant 0 : index
    %c0_6 = arith.constant 0 : index
    %6 = vector.load %arg4[%c0_5, %c0_6] : memref<128x256xf32, #tpu.memory_space<vmem>>, vector<128x256xf32>
    %cst_7 = arith.constant dense<0.000000e+00> : vector<128xf32>
    %7 = vector.multi_reduction <add>, %6, %cst_7 [1] : vector<128x256xf32> to vector<128xf32>
    %8 = vector.shape_cast %7 : vector<128xf32> to vector<128x1xf32>
    %cst_8 = arith.constant 1.000000e+00 : f32
    %9 = vector.broadcast %cst_8 : f32 to vector<128x1xf32>
    %10 = arith.addf %8, %9 : vector<128x1xf32>
    %11 = math.rsqrt %10 : vector<128x1xf32>
    %12 = math.absf %11 : vector<128x1xf32>
    %cst_9 = arith.constant 0x7F800000 : f32
    %13 = vector.broadcast %cst_9 : f32 to vector<128x1xf32>
    %14 = arith.cmpf oeq, %12, %13 : vector<128x1xf32>
    %cst_10 = arith.constant 0.000000e+00 : f32
    %15 = vector.broadcast %cst_10 : f32 to vector<128x1xf32>
    %16 = arith.select %14, %15, %11 : vector<128x1xi1>, vector<128x1xf32>
    %c0_11 = arith.constant 0 : index
    %c0_12 = arith.constant 0 : index
    %17 = vector.load %arg6[%c0_11, %c0_12] : memref<128x1xf32, #tpu.memory_space<vmem>>, vector<128x1xf32>
    tpu.vector_store %arg6[%c0_11, %c0_12], %16 {strides = array<i32>} : memref<128x1xf32, #tpu.memory_space<vmem>>, vector<128x1xf32>,
    %18 = vector.broadcast %16 : vector<128x1xf32> to vector<128x128xf32>
    %19 = arith.mulf %18, %5 : vector<128x128xf32>
    %c0_13 = arith.constant 0 : index
    %c0_14 = arith.constant 0 : index
    %20 = vector.load %arg5[%c0_13, %c0_14] : memref<128x128xf32, #tpu.memory_space<vmem>>, vector<128x128xf32>
    tpu.vector_store %arg5[%c0_13, %c0_14], %19 {strides = array<i32>} : memref<128x128xf32, #tpu.memory_space<vmem>>, vector<128x128xf32>,
    return
  }
  func.func @transform_0(%arg0: i32) -> (i32, i32) {
    %c0_i32 = arith.constant 0 : i32
    %c0_i32_0 = arith.constant 0 : i32
    return %arg0, %c0_i32 : i32, i32
  }
  func.func @transform_1(%arg0: i32) -> (i32, i32) {
    %c0_i32 = arith.constant 0 : i32
    %c0_i32_0 = arith.constant 0 : i32
    %c0_i32_1 = arith.constant 0 : i32
    return %c0_i32, %c0_i32_0 : i32, i32
  }
  func.func @transform_2(%arg0: i32) -> (i32, i32) {
    %c0_i32 = arith.constant 0 : i32
    %c0_i32_0 = arith.constant 0 : i32
    %c0_i32_1 = arith.constant 0 : i32
    return %c0_i32, %c0_i32_0 : i32, i32
  }
  func.func @transform_3(%arg0: i32) -> (i32, i32) {
    %c0_i32 = arith.constant 0 : i32
    %c0_i32_0 = arith.constant 0 : i32
    return %arg0, %c0_i32 : i32, i32
  }
  func.func @transform_4(%arg0: i32) -> (i32, i32) {
    %c0_i32 = arith.constant 0 : i32
    %c0_i32_0 = arith.constant 0 : i32
    return %arg0, %c0_i32 : i32, i32
  }
  func.func @transform_5(%arg0: i32) -> (i32, i32) {
    %c0_i32 = arith.constant 0 : i32
    %c0_i32_0 = arith.constant 0 : i32
    return %arg0, %c0_i32 : i32, i32
  }
}

</mosaic_0001>

<llo_original>
// kernel: tpu_custom_call.1
$region0: #{tpu_custom_call.1}
  #allocation0 [shape = 'u32[]', space=smem, size = 0x4, offset = 0x4, fixed_abs, tag = 'smem constant byte address 0x4 - core index']
  #allocation1 [shape = 'u32[144,128]{1,0:T(1,128)}', space=vmem, size = 0x12000, scoped, tag = 'internal scratch']
  %s0 = inlined_call_operand.vmem [shape: f32[256,16], index: 0, kind: input, shape index: {}]
  %s1 = inlined_call_operand.vmem [shape: f32[16,128], index: 1, kind: input, shape index: {}]
  %s2 = inlined_call_operand.vmem [shape: f32[1,128], index: 2, kind: input, shape index: {}]
  %s3 = inlined_call_operand.hbm [shape: f32[256,256], index: 3, kind: input, shape index: {}]
  %s4 = inlined_call_operand.hbm [shape: f32[256,128], index: 4, kind: output, shape index: {0}]
  %s5 = inlined_call_operand.vmem [shape: f32[256,1], index: 5, kind: output, shape index: {1}]
  %6 = xla_tuple %s4, %s5
  %s7 = sld [smem:[#allocation0]]
  $region61: #{tpu_custom_call.1} parent=0
    _
  %s9 = ssub.s32 1, %s7
  %s10 = scalar_select 0, %s9, %s7
  $region1: #{tpu_custom_call.1} parent=0
    #allocation2 [shape = 'u8[262144]{0}', space=vmem, size = 0x40000, scoped, tag = 'input window, operand 3']
    #allocation3 [shape = 's32[2]{0}', space=sflag, size = 0x8, scoped, tag = 'scoped memory for tpu_custom_call.1']
    #allocation4 [shape = 's32[2]{0}', space=sflag, size = 0x8, scoped, tag = 'scoped memory for tpu_custom_call.1']
    #allocation5 [shape = 'u8[131072]{0}', space=vmem, size = 0x20000, scoped, tag = 'output window, operand 0']
    %11 = vsyncpa [#allocation3], 0
    %s12 = scalar_lea.sflag [#allocation3], 1
    %13 = vsyncpa %s12, 0
    %14 = vsyncpa [#allocation4], 0
    %s15 = scalar_lea.sflag [#allocation4], 1
    %16 = vsyncpa %s15, 0
    loop: start=0, step=1, limit=4
    $region2: #{tpu_custom_call.1} parent=1 // loop_pre_header
      _
    $region3: #{tpu_custom_call.1} parent=1 // loop_header
      %s18 = sphi 0, %s22
      %p19 = scmp.ge.s32.totalorder %s18, 4
      %s28 = sphi 0, %s30
      %s31 = sphi 0, %s28
      %s32 = sphi 0, %s31
      %s48 = sphi 0, %s32
      %s52 = sphi 0, %s52
      %s54 = sphi 0, %s52
      %s55 = sphi 0, %s54
      %s69 = sphi 0, %s55
      %s73 = sphi 0, %s73
      %s75 = sphi 0, %s73
      %s76 = sphi 0, %s75
      %s90 = sphi 0, %s76
      %s96 = sphi 0, %s98
      %s99 = sphi 0, %s96
      %s100 = sphi 0, %s99
      %s116 = sphi 0, %s100
      %s122 = sphi 0, %s124
      %s125 = sphi 0, %s122
      %s126 = sphi 0, %s125
      %s142 = sphi 0, %s126
      %s148 = sphi 0, %s150
      %s151 = sphi 0, %s148
      %s152 = sphi 0, %s151
      %s168 = sphi 0, %s152
    $region4: #{tpu_custom_call.1} parent=1 // loop_header_branch
      %21 = sbr.rel (%p19) target = $region8
    $region5: #{tpu_custom_call.1} parent=1 // loop_body
      %s23 = ssub.s32 %s18, 1
      %s24 = ssub.s32 %s18, 2
      %s25 = sadd.s32 %s18, 1
      %s26 = ssub.s32 %s18, %s25
      %p27 = scmp.eq.s32.totalorder %s26, 0
      %s29 = sadd.s32 %s28, 1
      %s30 = scalar_select %p27, %s28, %s29
      %p33 = pneg %p27
      %p34 = scmp.eq.s32.totalorder %s18, 1
      %p35 = por %p33, %p34
      %p36 = scmp.ne.s32.totalorder %s28, %s31
      %p37 = scmp.eq.s32.totalorder %s18, 0
      %p38 = por %p36, %p37
      %p39 = scmp.ne.s32.totalorder %s28, %s31
      %p40 = scmp.eq.s32.totalorder %s23, 1
      %p41 = por %p39, %p40
      %p42 = scmp.ne.s32.totalorder %s31, %s32
      %p43 = scmp.eq.s32.totalorder %s23, 0
      %p44 = por %p42, %p43
      %p45 = scmp.ne.s32.totalorder %s31, %s32
      %p46 = scmp.eq.s32.totalorder %s24, 1
      %p47 = por %p45, %p46
      %p49 = scmp.ne.s32.totalorder %s32, %s48
      %p50 = scmp.eq.s32.totalorder %s24, 0
      %p51 = por %p49, %p50
      %s53 = sadd.s32 %s52, 1
      %p56 = scmp.eq.s32.totalorder %s18, 1
      %p57 = scmp.ne.s32.totalorder %s52, %s54
      %p58 = scmp.eq.s32.totalorder %s18, 0
      %p59 = por %p57, %p58
      %p60 = scmp.ne.s32.totalorder %s52, %s54
      %p61 = scmp.eq.s32.totalorder %s23, 1
      %p62 = por %p60, %p61
      %p63 = scmp.ne.s32.totalorder %s54, %s55
      %p64 = scmp.eq.s32.totalorder %s23, 0
      %p65 = por %p63, %p64
      %p66 = scmp.ne.s32.totalorder %s54, %s55
      %p67 = scmp.eq.s32.totalorder %s24, 1
      %p68 = por %p66, %p67
      %p70 = scmp.ne.s32.totalorder %s55, %s69
      %p71 = scmp.eq.s32.totalorder %s24, 0
      %p72 = por %p70, %p71
      %s74 = sadd.s32 %s73, 1
      %p77 = scmp.eq.s32.totalorder %s18, 1
      %p78 = scmp.ne.s32.totalorder %s73, %s75
      %p79 = scmp.eq.s32.totalorder %s18, 0
      %p80 = por %p78, %p79
      %p81 = scmp.ne.s32.totalorder %s73, %s75
      %p82 = scmp.eq.s32.totalorder %s23, 1
      %p83 = por %p81, %p82
      %p84 = scmp.ne.s32.totalorder %s75, %s76
      %p85 = scmp.eq.s32.totalorder %s23, 0
      %p86 = por %p84, %p85
      %p87 = scmp.ne.s32.totalorder %s75, %s76
      %p88 = scmp.eq.s32.totalorder %s24, 1
      %p89 = por %p87, %p88
      %p91 = scmp.ne.s32.totalorder %s76, %s90
      %p92 = scmp.eq.s32.totalorder %s24, 0
      %p93 = por %p91, %p92
      %s94 = ssub.s32 %s18, %s25
      %p95 = scmp.eq.s32.totalorder %s94, 0
      %s97 = sadd.s32 %s96, 1
      %s98 = scalar_select %p95, %s96, %s97
      %p101 = pneg %p95
      %p102 = scmp.eq.s32.totalorder %s18, 1
      %p103 = por %p101, %p102
      %p104 = scmp.ne.s32.totalorder %s96, %s99
      %p105 = scmp.eq.s32.totalorder %s18, 0
      %p106 = por %p104, %p105
      %p107 = scmp.ne.s32.totalorder %s96, %s99
      %p108 = scmp.eq.s32.totalorder %s23, 1
      %p109 = por %p107, %p108
      %p110 = scmp.ne.s32.totalorder %s99, %s100
      %p111 = scmp.eq.s32.totalorder %s23, 0
      %p112 = por %p110, %p111
      %p113 = scmp.ne.s32.totalorder %s99, %s100
      %p114 = scmp.eq.s32.totalorder %s24, 1
      %p115 = por %p113, %p114
      %p117 = scmp.ne.s32.totalorder %s100, %s116
      %p118 = scmp.eq.s32.totalorder %s24, 0
      %p119 = por %p117, %p118
      %s120 = ssub.s32 %s18, %s25
      %p121 = scmp.eq.s32.totalorder %s120, 0
      %s123 = sadd.s32 %s122, 1
      %s124 = scalar_select %p121, %s122, %s123
      %p127 = pneg %p121
      %p128 = scmp.eq.s32.totalorder %s18, 1
      %p129 = por %p127, %p128
      %p130 = scmp.ne.s32.totalorder %s122, %s125
      %p131 = scmp.eq.s32.totalorder %s18, 0
      %p132 = por %p130, %p131
      %p133 = scmp.ne.s32.totalorder %s122, %s125
      %p134 = scmp.eq.s32.totalorder %s23, 1
      %p135 = por %p133, %p134
      %p136 = scmp.ne.s32.totalorder %s125, %s126
      %p137 = scmp.eq.s32.totalorder %s23, 0
      %p138 = por %p136, %p137
      %p139 = scmp.ne.s32.totalorder %s125, %s126
      %p140 = scmp.eq.s32.totalorder %s24, 1
      %p141 = por %p139, %p140
      %p143 = scmp.ne.s32.totalorder %s126, %s142
      %p144 = scmp.eq.s32.totalorder %s24, 0
      %p145 = por %p143, %p144
      %s146 = ssub.s32 %s18, %s25
      %p147 = scmp.eq.s32.totalorder %s146, 0
      %s149 = sadd.s32 %s148, 1
      %s150 = scalar_select %p147, %s148, %s149
      %p153 = pneg %p147
      %p154 = scmp.eq.s32.totalorder %s18, 1
      %p155 = por %p153, %p154
      %p156 = scmp.ne.s32.totalorder %s148, %s151
      %p157 = scmp.eq.s32.totalorder %s18, 0
      %p158 = por %p156, %p157
      %p159 = scmp.ne.s32.totalorder %s148, %s151
      %p160 = scmp.eq.s32.totalorder %s23, 1
      %p161 = por %p159, %p160
      %p162 = scmp.ne.s32.totalorder %s151, %s152
      %p163 = scmp.eq.s32.totalorder %s23, 0
      %p164 = por %p162, %p163
      %p165 = scmp.ne.s32.totalorder %s151, %s152
      %p166 = scmp.eq.s32.totalorder %s24, 1
      %p167 = por %p165, %p166
      %p169 = scmp.ne.s32.totalorder %s152, %s168
      %p170 = scmp.eq.s32.totalorder %s24, 0
      %p171 = por %p169, %p170
      %p172 = scmp.le.s32.totalorder 1, %s18
      %p173 = scmp.lt.s32.totalorder %s18, 3
      %p174 = pnand %p172, %p173
      %p175 = pneg %p174
      // Predicated region
      $region9: #{tpu_custom_call.1} parent=5 // pred_check
        _
      $region10: #{tpu_custom_call.1} parent=5 // pred_check_branch
        %177 = sbr.rel (%p174) target = $region12
      $region11: #{tpu_custom_call.1} parent=5 // pred_region
        %s178 = ssub.s32 %s18, 1
        // Predicated region
        $region13: #{tpu_custom_call.1} parent=11 // pred_check
          %p179 = pneg %p65
        $region14: #{tpu_custom_call.1} parent=11 // pred_check_branch
          %181 = sbr.rel (%p179) target = $region16
        $region15: #{tpu_custom_call.1} parent=11 // pred_region
          _
        $region16: #{tpu_custom_call.1} parent=11 // pred_fallthru
          _
        // Predicated region
        $region17: #{tpu_custom_call.1} parent=11 // pred_check
          %p182 = pneg %p86
        $region18: #{tpu_custom_call.1} parent=11 // pred_check_branch
          %184 = sbr.rel (%p182) target = $region20
        $region19: #{tpu_custom_call.1} parent=11 // pred_region
          _
        $region20: #{tpu_custom_call.1} parent=11 // pred_fallthru
          _
      $region12: #{tpu_custom_call.1} parent=5 // pred_fallthru
        _
      %p185 = scmp.lt.s32.totalorder %s18, 2
      // Predicated region
      $region21: #{tpu_custom_call.1} parent=5 // pred_check
        %p186 = pneg %p185
      $region22: #{tpu_custom_call.1} parent=5 // pred_check_branch
        %188 = sbr.rel (%p186) target = $region24
      $region23: #{tpu_custom_call.1} parent=5 // pred_region
        // Predicated region
        $region25: #{tpu_custom_call.1} parent=23 // pred_check
          %p189 = pneg %p38
        $region26: #{tpu_custom_call.1} parent=23 // pred_check_branch
          %191 = sbr.rel (%p189) target = $region28
        $region27: #{tpu_custom_call.1} parent=23 // pred_region
          %s192 = smul.u32 16, %s18
          %p193 = scmp.lt.s32.totalorder %s192, 31
          %s194 = scalar_select %p193, %s192, 31
          %s195 = smul.addr %s194, 8
          %s196 = scalar_lea.vmem %s0, %s195
          %s197 = smul.u32 16, %s18
        $region28: #{tpu_custom_call.1} parent=23 // pred_fallthru
          _
        // Predicated region
        $region29: #{tpu_custom_call.1} parent=23 // pred_check
          %p198 = pneg %p106
        $region30: #{tpu_custom_call.1} parent=23 // pred_check_branch
          %200 = sbr.rel (%p198) target = $region32
        $region31: #{tpu_custom_call.1} parent=23 // pred_region
          %s201 = sand.u32 %s96, 1
          %s202 = scalar_lea.sflag [#allocation3], %s201
          %s203 = sand.u32 %s96, 1
          %s204 = smul.addr %s203, 256
          %s205 = scalar_lea.vmem [#allocation2], %s204
          %s206 = smul.u32 16, %s18
          %s208 = ssub.s32 4096, 4096
          %209 = vsyncadd %s202, %s208
          %s210 = smul.addr %s206, 2
          %s211 = smul.addr %s210, 128
          %s212 = scalar_lea.hbm %s3, %s211
          %s213 = sshll.u32 %s205, 4
          %s214 = int_to_ptr.vmem [resolvable:$true] %s213
          %219 = dma.hbm_to_vmem [thread:$0]  %s212, 4096, %s214, %s202, 256, 256, 16
        $region32: #{tpu_custom_call.1} parent=23 // pred_fallthru
          _
      $region24: #{tpu_custom_call.1} parent=5 // pred_fallthru
        _
      %p220 = scmp.le.s32.totalorder 1, %s18
      %p221 = scmp.lt.s32.totalorder %s18, 3
      %p222 = pnand %p220, %p221
      %p223 = pneg %p222
      // Predicated region
      $region33: #{tpu_custom_call.1} parent=5 // pred_check
        _
      $region34: #{tpu_custom_call.1} parent=5 // pred_check_branch
        %225 = sbr.rel (%p222) target = $region36
      $region35: #{tpu_custom_call.1} parent=5 // pred_region
        %s226 = ssub.s32 %s18, 1
        %s227 = sand.u32 %s99, 1
        %s228 = scalar_lea.sflag [#allocation3], %s227
        %s229 = sand.u32 %s99, 1
        %s230 = smul.addr %s229, 256
        %s231 = scalar_lea.vmem [#allocation2], %s230
        // Predicated region
        $region37: #{tpu_custom_call.1} parent=35 // pred_check
          %p232 = pneg %p112
        $region38: #{tpu_custom_call.1} parent=35 // pred_check_branch
          %234 = sbr.rel (%p232) target = $region40
        $region39: #{tpu_custom_call.1} parent=35 // pred_region
          %235 = dma.done %s228, 4096
        $region40: #{tpu_custom_call.1} parent=35 // pred_fallthru
          _
        %s236 = smul.u32 16, %s23
        %p237 = scmp.lt.s32.totalorder %s236, 31
        %s238 = scalar_select %p237, %s236, 31
        %s239 = smul.addr %s238, 8
        %s240 = scalar_lea.vmem %s0, %s239
        %p241 = pneg %p44
        %p242 = pneg %p41
        %p243 = pneg %p65
        %p244 = pneg %p62
        %p245 = pneg %p86
        %p246 = pneg %p83
        %s247 = sand.u32 %s99, 1
        %s248 = scalar_lea.sflag [#allocation3], %s247
        %s249 = sand.u32 %s99, 1
        %s250 = smul.addr %s249, 256
        %s251 = scalar_lea.vmem [#allocation2], %s250
        %p252 = pneg %p112
        %p253 = pneg %p109
        %p254 = pneg %p138
        %p255 = pneg %p135
        %s256 = sand.u32 %s125, 1
        %s257 = scalar_lea.sflag [#allocation4], %s256
        %s258 = sand.u32 %s125, 1
        %s259 = smul.addr %s258, 128
        %s260 = scalar_lea.vmem [#allocation5], %s259
        %p261 = pneg %p164
        %p262 = pneg %p161
        %s263 = smul.u32 16, %s23
        %p264 = scmp.lt.s32.totalorder %s263, 31
        %s265 = scalar_select %p264, %s263, 31
        %s266 = smul.addr %s265, 8
        %s267 = scalar_lea.vmem %s5, %s266
        %s268 = smul.u32 16, %s23
        %p269 = scmp.lt.s32.totalorder %s268, 31
        %s270 = scalar_select %p269, %s268, 31
        %s271 = smul.addr %s270, 8
        %s272 = scalar_lea.vmem %s0, %s271
        %s273 = smul.u32 16, %s23
        %s274 = smul.u32 16, %s23
        %s275 = smul.u32 16, %s23
        %s276 = smul.u32 16, %s23
        %p277 = scmp.lt.s32.totalorder %s276, 31
        %s278 = scalar_select %p277, %s276, 31
        %s279 = smul.addr %s278, 8
        %s280 = scalar_lea.vmem %s5, %s279
        %s281 = smul.u32 16, %s23
        %v282 = vld [vmem:[%s272] sm:$0xff]
        %v283 = vld [vmem:[%s272 + $0x8] sm:$0xff]
        %v284 = vld [vmem:[%s272 + $0x10] sm:$0xff]
        %v285 = vld [vmem:[%s272 + $0x18] sm:$0xff]
        %v286 = vld [vmem:[%s272 + $0x20] sm:$0xff]
        %v287 = vld [vmem:[%s272 + $0x28] sm:$0xff]
        %v288 = vld [vmem:[%s272 + $0x30] sm:$0xff]
        %v289 = vld [vmem:[%s272 + $0x38] sm:$0xff]
        %v290 = vld [vmem:[%s272 + $0x40] sm:$0xff]
        %v291 = vld [vmem:[%s272 + $0x48] sm:$0xff]
        %v292 = vld [vmem:[%s272 + $0x50] sm:$0xff]
        %v293 = vld [vmem:[%s272 + $0x58] sm:$0xff]
        %v294 = vld [vmem:[%s272 + $0x60] sm:$0xff]
        %v295 = vld [vmem:[%s272 + $0x68] sm:$0xff]
        %v296 = vld [vmem:[%s272 + $0x70] sm:$0xff]
        %v297 = vld [vmem:[%s272 + $0x78] sm:$0xff]
        %v298 = vld [vmem:[%s1] sm:$0xff]
        %v299 = vld [vmem:[%s1 + $0x8] sm:$0xff]
        %v300 = vld [vmem:[%s2] sm:$0x1]
        %v302 = vlaneseq
        %v303 = vshrl.u32 %v302, 7
        %v304 = vsub.s32 0, %v303
        %v305 = vrot.slane %v300, %v304
        %vm307 = vcmask 130048
        %v309 = vsel %vm307, %v282, 0
        %v312 = vsel %vm307, %v283, 0
        %v315 = vsel %vm307, %v284, 0
        %v318 = vsel %vm307, %v285, 0
        %v321 = vsel %vm307, %v286, 0
        %v324 = vsel %vm307, %v287, 0
        %v327 = vsel %vm307, %v288, 0
        %v330 = vsel %vm307, %v289, 0
        %v333 = vsel %vm307, %v290, 0
        %v336 = vsel %vm307, %v291, 0
        %v339 = vsel %vm307, %v292, 0
        %v342 = vsel %vm307, %v293, 0
        %v345 = vsel %vm307, %v294, 0
        %v348 = vsel %vm307, %v295, 0
        %v351 = vsel %vm307, %v296, 0
        %v354 = vsel %vm307, %v297, 0
        %356 = vmatprep.subr.mxu0 0.0
        %357 = vmatpush1.msra.mxu0 %v298
        %358 = vmatprep.subr.mxu0 0.0
        %359 = vmatpush1.msra.mxu0 %v299
        %360 = vmatprep.subr.mxu0 0.0
        %361 = vmatpush1.msra.mxu0 0.0
        %362 = vmatprep.subr.mxu0 0.0
        %363 = vmatpush1.msra.mxu0 0.0
        %364 = vmatprep.subr.mxu0 0.0
        %365 = vmatpush1.msra.mxu0 0.0
        %366 = vmatprep.subr.mxu0 0.0
        %367 = vmatpush1.msra.mxu0 0.0
        %368 = vmatprep.subr.mxu0 0.0
        %369 = vmatpush1.msra.mxu0 0.0
        %370 = vmatprep.subr.mxu0 0.0
        %371 = vmatpush1.msra.mxu0 0.0
        %372 = vmatprep.subr.mxu0 0.0
        %373 = vmatpush1.msra.mxu0 0.0
        %374 = vmatprep.subr.mxu0 0.0
        %375 = vmatpush1.msra.mxu0 0.0
        %376 = vmatprep.subr.mxu0 0.0
        %377 = vmatpush1.msra.mxu0 0.0
        %378 = vmatprep.subr.mxu0 0.0
        %379 = vmatpush1.msra.mxu0 0.0
        %380 = vmatprep.subr.mxu0 0.0
        %381 = vmatpush1.msra.mxu0 0.0
        %382 = vmatprep.subr.mxu0 0.0
        %383 = vmatpush1.msra.mxu0 0.0
        %384 = vmatprep.subr.mxu0 0.0
        %385 = vmatpush1.msra.mxu0 0.0
        %386 = vmatprep.subr.mxu0 0.0
        %387 = vmatpush1.msra.mxu0 0.0
        %388 = vmatprep.subr.mxu0 0.0
        %389 = vmatpush1.msra.mxu0 0.0
        %390 = vmatprep.subr.mxu0 0.0
        %391 = vmatpush1.msra.mxu0 0.0
        %392 = vmatprep.subr.mxu0 0.0
        %393 = vmatpush1.msra.mxu0 0.0
        %394 = vmatprep.subr.mxu0 0.0
        %395 = vmatpush1.msra.mxu0 0.0
        %396 = vmatprep.subr.mxu0 0.0
        %397 = vmatpush1.msra.mxu0 0.0
        %398 = vmatprep.subr.mxu0 0.0
        %399 = vmatpush1.msra.mxu0 0.0
        %400 = vmatprep.subr.mxu0 0.0
        %401 = vmatpush1.msra.mxu0 0.0
        %402 = vmatprep.subr.mxu0 0.0
        %403 = vmatpush1.msra.mxu0 0.0
        %404 = vmatprep.subr.mxu0 0.0
        %405 = vmatpush1.msra.mxu0 0.0
        %406 = vmatprep.subr.mxu0 0.0
        %407 = vmatpush1.msra.mxu0 0.0
        %408 = vmatprep.subr.mxu0 0.0
        %409 = vmatpush1.msra.mxu0 0.0
        %410 = vmatprep.subr.mxu0 0.0
        %411 = vmatpush1.msra.mxu0 0.0
        %412 = vmatprep.subr.mxu0 0.0
        %413 = vmatpush1.msra.mxu0 0.0
        %414 = vmatprep.subr.mxu0 0.0
        %415 = vmatpush1.msra.mxu0 0.0
        %416 = vmatprep.subr.mxu0 0.0
        %417 = vmatpush1.msra.mxu0 0.0
        %418 = vmatprep.subr.mxu0 0.0
        %419 = vmatpush1.msra.mxu0 0.0
        %420 = vmatprep.mubr.f32.mxu0 0.0
        %421 = vmatmul.mubr.f32.gmra.mrb[0].mxu0 %v309
        %v422 = vpop.f32.mrb[0].mxu0
        %v423 = vadd.f32 %v305, %v422
        %v424 = vpop.f32.mrb[0].mxu0
        %425 = vmatprep.mubr.f32.mxu0 0.0
        %426 = vmatmul.mubr.f32.gmra.mrb[0].mxu0 %v312
        %v427 = vpop.f32.mrb[0].mxu0
        %v428 = vadd.f32 %v305, %v427
        %v429 = vpop.f32.mrb[0].mxu0
        %430 = vmatprep.mubr.f32.mxu0 0.0
        %431 = vmatmul.mubr.f32.gmra.mrb[0].mxu0 %v315
        %v432 = vpop.f32.mrb[0].mxu0
        %v433 = vadd.f32 %v305, %v432
        %v434 = vpop.f32.mrb[0].mxu0
        %435 = vmatprep.mubr.f32.mxu0 0.0
        %436 = vmatmul.mubr.f32.gmra.mrb[0].mxu0 %v318
        %v437 = vpop.f32.mrb[0].mxu0
        %v438 = vadd.f32 %v305, %v437
        %v439 = vpop.f32.mrb[0].mxu0
        %440 = vmatprep.mubr.f32.mxu0 0.0
        %441 = vmatmul.mubr.f32.gmra.mrb[0].mxu0 %v321
        %v442 = vpop.f32.mrb[0].mxu0
        %v443 = vadd.f32 %v305, %v442
        %v444 = vpop.f32.mrb[0].mxu0
        %445 = vmatprep.mubr.f32.mxu0 0.0
        %446 = vmatmul.mubr.f32.gmra.mrb[0].mxu0 %v324
        %v447 = vpop.f32.mrb[0].mxu0
        %v448 = vadd.f32 %v305, %v447
        %v449 = vpop.f32.mrb[0].mxu0
        %450 = vmatprep.mubr.f32.mxu0 0.0
        %451 = vmatmul.mubr.f32.gmra.mrb[0].mxu0 %v327
        %v452 = vpop.f32.mrb[0].mxu0
        %v453 = vadd.f32 %v305, %v452
        %v454 = vpop.f32.mrb[0].mxu0
        %455 = vmatprep.mubr.f32.mxu0 0.0
        %456 = vmatmul.mubr.f32.gmra.mrb[0].mxu0 %v330
        %v457 = vpop.f32.mrb[0].mxu0
        %v458 = vadd.f32 %v305, %v457
        %v459 = vpop.f32.mrb[0].mxu0
        %460 = vmatprep.mubr.f32.mxu0 0.0
        %461 = vmatmul.mubr.f32.gmra.mrb[0].mxu0 %v333
        %v462 = vpop.f32.mrb[0].mxu0
        %v463 = vadd.f32 %v305, %v462
        %v464 = vpop.f32.mrb[0].mxu0
        %465 = vmatprep.mubr.f32.mxu0 0.0
        %466 = vmatmul.mubr.f32.gmra.mrb[0].mxu0 %v336
        %v467 = vpop.f32.mrb[0].mxu0
        %v468 = vadd.f32 %v305, %v467
        %v469 = vpop.f32.mrb[0].mxu0
        %470 = vmatprep.mubr.f32.mxu0 0.0
        %471 = vmatmul.mubr.f32.gmra.mrb[0].mxu0 %v339
        %v472 = vpop.f32.mrb[0].mxu0
        %v473 = vadd.f32 %v305, %v472
        %v474 = vpop.f32.mrb[0].mxu0
        %475 = vmatprep.mubr.f32.mxu0 0.0
        %476 = vmatmul.mubr.f32.gmra.mrb[0].mxu0 %v342
        %v477 = vpop.f32.mrb[0].mxu0
        %v478 = vadd.f32 %v305, %v477
        %v479 = vpop.f32.mrb[0].mxu0
        %480 = vmatprep.mubr.f32.mxu0 0.0
        %481 = vmatmul.mubr.f32.gmra.mrb[0].mxu0 %v345
        %v482 = vpop.f32.mrb[0].mxu0
        %v483 = vadd.f32 %v305, %v482
        %v484 = vpop.f32.mrb[0].mxu0
        %485 = vmatprep.mubr.f32.mxu0 0.0
        %486 = vmatmul.mubr.f32.gmra.mrb[0].mxu0 %v348
        %v487 = vpop.f32.mrb[0].mxu0
        %v488 = vadd.f32 %v305, %v487
        %v489 = vpop.f32.mrb[0].mxu0
        %490 = vmatprep.mubr.f32.mxu0 0.0
        %491 = vmatmul.mubr.f32.gmra.mrb[0].mxu0 %v351
        %v492 = vpop.f32.mrb[0].mxu0
        %v493 = vadd.f32 %v305, %v492
        %v494 = vpop.f32.mrb[0].mxu0
        %495 = vmatprep.mubr.f32.mxu0 0.0
        %496 = vmatmul.mubr.f32.gmra.mrb[0].mxu0 %v354
        %v497 = vpop.f32.mrb[0].mxu0
        %v498 = vadd.f32 %v305, %v497
        %v499 = vpop.f32.mrb[0].mxu0
        %500 = vdwg.mxu0
        %v501 = vld [vmem:[%s231] sm:$0xff]
        %v502 = vld [vmem:[%s231 + $0x8] sm:$0xff]
        %v503 = vld [vmem:[%s231 + $0x10] sm:$0xff]
        %v504 = vld [vmem:[%s231 + $0x18] sm:$0xff]
        %v505 = vld [vmem:[%s231 + $0x20] sm:$0xff]
        %v506 = vld [vmem:[%s231 + $0x28] sm:$0xff]
        %v507 = vld [vmem:[%s231 + $0x30] sm:$0xff]
        %v508 = vld [vmem:[%s231 + $0x38] sm:$0xff]
        %v509 = vld [vmem:[%s231 + $0x40] sm:$0xff]
        %v510 = vld [vmem:[%s231 + $0x48] sm:$0xff]
        %v511 = vld [vmem:[%s231 + $0x50] sm:$0xff]
        %v512 = vld [vmem:[%s231 + $0x58] sm:$0xff]
        %v513 = vld [vmem:[%s231 + $0x60] sm:$0xff]
        %v514 = vld [vmem:[%s231 + $0x68] sm:$0xff]
        %v515 = vld [vmem:[%s231 + $0x70] sm:$0xff]
        %v516 = vld [vmem:[%s231 + $0x78] sm:$0xff]
        %v517 = vld [vmem:[%s231 + $0x80] sm:$0xff]
        %v518 = vld [vmem:[%s231 + $0x88] sm:$0xff]
        %v519 = vld [vmem:[%s231 + $0x90] sm:$0xff]
        %v520 = vld [vmem:[%s231 + $0x98] sm:$0xff]
        %v521 = vld [vmem:[%s231 + $0xa0] sm:$0xff]
        %v522 = vld [vmem:[%s231 + $0xa8] sm:$0xff]
        %v523 = vld [vmem:[%s231 + $0xb0] sm:$0xff]
        %v524 = vld [vmem:[%s231 + $0xb8] sm:$0xff]
        %v525 = vld [vmem:[%s231 + $0xc0] sm:$0xff]
        %v526 = vld [vmem:[%s231 + $0xc8] sm:$0xff]
        %v527 = vld [vmem:[%s231 + $0xd0] sm:$0xff]
        %v528 = vld [vmem:[%s231 + $0xd8] sm:$0xff]
        %v529 = vld [vmem:[%s231 + $0xe0] sm:$0xff]
        %v530 = vld [vmem:[%s231 + $0xe8] sm:$0xff]
        %v531 = vld [vmem:[%s231 + $0xf0] sm:$0xff]
        %v532 = vld [vmem:[%s231 + $0xf8] sm:$0xff]
        %v533 = vadd.f32 %v501, %v502
        %534 = vadd.xlane.f32.xlu0 %v533
        %v535 = vpop.xlane.xlu0 %534
        %v536 = vadd.f32 %v503, %v504
        %537 = vadd.xlane.f32.xlu0 %v536
        %v538 = vpop.xlane.xlu0 %537
        %v539 = vadd.f32 %v505, %v506
        %540 = vadd.xlane.f32.xlu0 %v539
        %v541 = vpop.xlane.xlu0 %540
        %v542 = vadd.f32 %v507, %v508
        %543 = vadd.xlane.f32.xlu0 %v542
        %v544 = vpop.xlane.xlu0 %543
        %v545 = vadd.f32 %v509, %v510
        %546 = vadd.xlane.f32.xlu0 %v545
        %v547 = vpop.xlane.xlu0 %546
        %v548 = vadd.f32 %v511, %v512
        %549 = vadd.xlane.f32.xlu0 %v548
        %v550 = vpop.xlane.xlu0 %549
        %v551 = vadd.f32 %v513, %v514
        %552 = vadd.xlane.f32.xlu0 %v551
        %v553 = vpop.xlane.xlu0 %552
        %v554 = vadd.f32 %v515, %v516
        %555 = vadd.xlane.f32.xlu0 %v554
        %v556 = vpop.xlane.xlu0 %555
        %v557 = vadd.f32 %v517, %v518
        %558 = vadd.xlane.f32.xlu0 %v557
        %v559 = vpop.xlane.xlu0 %558
        %v560 = vadd.f32 %v519, %v520
        %561 = vadd.xlane.f32.xlu0 %v560
        %v562 = vpop.xlane.xlu0 %561
        %v563 = vadd.f32 %v521, %v522
        %564 = vadd.xlane.f32.xlu0 %v563
        %v565 = vpop.xlane.xlu0 %564
        %v566 = vadd.f32 %v523, %v524
        %567 = vadd.xlane.f32.xlu0 %v566
        %v568 = vpop.xlane.xlu0 %567
        %v569 = vadd.f32 %v525, %v526
        %570 = vadd.xlane.f32.xlu0 %v569
        %v571 = vpop.xlane.xlu0 %570
        %v572 = vadd.f32 %v527, %v528
        %573 = vadd.xlane.f32.xlu0 %v572
        %v574 = vpop.xlane.xlu0 %573
        %v575 = vadd.f32 %v529, %v530
        %576 = vadd.xlane.f32.xlu0 %v575
        %v577 = vpop.xlane.xlu0 %576
        %v578 = vadd.f32 %v531, %v532
        %579 = vadd.xlane.f32.xlu0 %v578
        %v580 = vpop.xlane.xlu0 %579
        %v581 = vadd.f32 %v535, 1.0
        %v582 = vadd.f32 %v538, 1.0
        %v583 = vadd.f32 %v541, 1.0
        %v584 = vadd.f32 %v544, 1.0
        %v585 = vadd.f32 %v547, 1.0
        %v586 = vadd.f32 %v550, 1.0
        %v587 = vadd.f32 %v553, 1.0
        %v588 = vadd.f32 %v556, 1.0
        %v589 = vadd.f32 %v559, 1.0
        %v590 = vadd.f32 %v562, 1.0
        %v591 = vadd.f32 %v565, 1.0
        %v592 = vadd.f32 %v568, 1.0
        %v593 = vadd.f32 %v571, 1.0
        %v594 = vadd.f32 %v574, 1.0
        %v595 = vadd.f32 %v577, 1.0
        %v596 = vadd.f32 %v580, 1.0
        %v597 = vrsqrt.pop %v581
        %v598 = vrsqrt.pop %v582
        %v599 = vrsqrt.pop %v583
        %v600 = vrsqrt.pop %v584
        %v601 = vrsqrt.pop %v585
        %v602 = vrsqrt.pop %v586
        %v603 = vrsqrt.pop %v587
        %v604 = vrsqrt.pop %v588
        %v605 = vrsqrt.pop %v589
        %v606 = vrsqrt.pop %v590
        %v607 = vrsqrt.pop %v591
        %v608 = vrsqrt.pop %v592
        %v609 = vrsqrt.pop %v593
        %v610 = vrsqrt.pop %v594
        %v611 = vrsqrt.pop %v595
        %v612 = vrsqrt.pop %v596
        %v613 = vand.u32 2147483647, %v597
        %v614 = vand.u32 2147483647, %v598
        %v615 = vand.u32 2147483647, %v599
        %v616 = vand.u32 2147483647, %v600
        %v617 = vand.u32 2147483647, %v601
        %v618 = vand.u32 2147483647, %v602
        %v619 = vand.u32 2147483647, %v603
        %v620 = vand.u32 2147483647, %v604
        %v621 = vand.u32 2147483647, %v605
        %v622 = vand.u32 2147483647, %v606
        %v623 = vand.u32 2147483647, %v607
        %v624 = vand.u32 2147483647, %v608
        %v625 = vand.u32 2147483647, %v609
        %v626 = vand.u32 2147483647, %v610
        %v627 = vand.u32 2147483647, %v611
        %v628 = vand.u32 2147483647, %v612
        %vm629 = vcmp.eq.f32.partialorder %v613, inf
        %vm630 = vcmp.eq.f32.partialorder %v614, inf
        %vm631 = vcmp.eq.f32.partialorder %v615, inf
        %vm632 = vcmp.eq.f32.partialorder %v616, inf
        %vm633 = vcmp.eq.f32.partialorder %v617, inf
        %vm634 = vcmp.eq.f32.partialorder %v618, inf
        %vm635 = vcmp.eq.f32.partialorder %v619, inf
        %vm636 = vcmp.eq.f32.partialorder %v620, inf
        %vm637 = vcmp.eq.f32.partialorder %v621, inf
        %vm638 = vcmp.eq.f32.partialorder %v622, inf
        %vm639 = vcmp.eq.f32.partialorder %v623, inf
        %vm640 = vcmp.eq.f32.partialorder %v624, inf
        %vm641 = vcmp.eq.f32.partialorder %v625, inf
        %vm642 = vcmp.eq.f32.partialorder %v626, inf
        %vm643 = vcmp.eq.f32.partialorder %v627, inf
        %vm644 = vcmp.eq.f32.partialorder %v628, inf
        %v645 = vsel %vm629, 0.0, %v597
        %v646 = vsel %vm630, 0.0, %v598
        %v647 = vsel %vm631, 0.0, %v599
        %v648 = vsel %vm632, 0.0, %v600
        %v649 = vsel %vm633, 0.0, %v601
        %v650 = vsel %vm634, 0.0, %v602
        %v651 = vsel %vm635, 0.0, %v603
        %v652 = vsel %vm636, 0.0, %v604
        %v653 = vsel %vm637, 0.0, %v605
        %v654 = vsel %vm638, 0.0, %v606
        %v655 = vsel %vm639, 0.0, %v607
        %v656 = vsel %vm640, 0.0, %v608
        %v657 = vsel %vm641, 0.0, %v609
        %v658 = vsel %vm642, 0.0, %v610
        %v659 = vsel %vm643, 0.0, %v611
        %v660 = vsel %vm644, 0.0, %v612
        %vm661 = vcmask 7168
        %662 = vst.msk [vmem:[%s280] sm:$0xff] %vm661, %v645
        %663 = vst.msk [vmem:[%s280 + $0x8] sm:$0xff] %vm661, %v646
        %664 = vst.msk [vmem:[%s280 + $0x10] sm:$0xff] %vm661, %v647
        %665 = vst.msk [vmem:[%s280 + $0x18] sm:$0xff] %vm661, %v648
        %666 = vst.msk [vmem:[%s280 + $0x20] sm:$0xff] %vm661, %v649
        %667 = vst.msk [vmem:[%s280 + $0x28] sm:$0xff] %vm661, %v650
        %668 = vst.msk [vmem:[%s280 + $0x30] sm:$0xff] %vm661, %v651
        %669 = vst.msk [vmem:[%s280 + $0x38] sm:$0xff] %vm661, %v652
        %670 = vst.msk [vmem:[%s280 + $0x40] sm:$0xff] %vm661, %v653
        %671 = vst.msk [vmem:[%s280 + $0x48] sm:$0xff] %vm661, %v654
        %672 = vst.msk [vmem:[%s280 + $0x50] sm:$0xff] %vm661, %v655
        %673 = vst.msk [vmem:[%s280 + $0x58] sm:$0xff] %vm661, %v656
        %674 = vst.msk [vmem:[%s280 + $0x60] sm:$0xff] %vm661, %v657
        %675 = vst.msk [vmem:[%s280 + $0x68] sm:$0xff] %vm661, %v658
        %676 = vst.msk [vmem:[%s280 + $0x70] sm:$0xff] %vm661, %v659
        %677 = vst.msk [vmem:[%s280 + $0x78] sm:$0xff] %vm661, %v660
        %v678 = vmul.f32 %v645, %v423
        %v679 = vmul.f32 %v646, %v428
        %v680 = vmul.f32 %v647, %v433
        %v681 = vmul.f32 %v648, %v438
        %v682 = vmul.f32 %v649, %v443
        %v683 = vmul.f32 %v650, %v448
        %v684 = vmul.f32 %v651, %v453
        %v685 = vmul.f32 %v652, %v458
        %v686 = vmul.f32 %v653, %v463
        %v687 = vmul.f32 %v654, %v468
        %v688 = vmul.f32 %v655, %v473
        %v689 = vmul.f32 %v656, %v478
        %v690 = vmul.f32 %v657, %v483
        %v691 = vmul.f32 %v658, %v488
        %v692 = vmul.f32 %v659, %v493
        %v693 = vmul.f32 %v660, %v498
        %694 = vst [vmem:[%s260] sm:$0xff] %v678
        %695 = vst [vmem:[%s260 + $0x8] sm:$0xff] %v679
        %696 = vst [vmem:[%s260 + $0x10] sm:$0xff] %v680
        %697 = vst [vmem:[%s260 + $0x18] sm:$0xff] %v681
        %698 = vst [vmem:[%s260 + $0x20] sm:$0xff] %v682
        %699 = vst [vmem:[%s260 + $0x28] sm:$0xff] %v683
        %700 = vst [vmem:[%s260 + $0x30] sm:$0xff] %v684
        %701 = vst [vmem:[%s260 + $0x38] sm:$0xff] %v685
        %702 = vst [vmem:[%s260 + $0x40] sm:$0xff] %v686
        %703 = vst [vmem:[%s260 + $0x48] sm:$0xff] %v687
        %704 = vst [vmem:[%s260 + $0x50] sm:$0xff] %v688
        %705 = vst [vmem:[%s260 + $0x58] sm:$0xff] %v689
        %706 = vst [vmem:[%s260 + $0x60] sm:$0xff] %v690
        %707 = vst [vmem:[%s260 + $0x68] sm:$0xff] %v691
        %708 = vst [vmem:[%s260 + $0x70] sm:$0xff] %v692
        %709 = vst [vmem:[%s260 + $0x78] sm:$0xff] %v693
        %s710 = sand.u32 %s125, 1
        %s711 = scalar_lea.sflag [#allocation4], %s710
        %s712 = sand.u32 %s125, 1
        %s713 = smul.addr %s712, 128
        %s714 = scalar_lea.vmem [#allocation5], %s713
        %s715 = smul.u32 16, %s23
        %p716 = scmp.lt.s32.totalorder %s715, 31
        %s717 = scalar_select %p716, %s715, 31
        %s718 = smul.addr %s717, 8
        %s719 = scalar_lea.vmem %s5, %s718
        // Predicated region
        $region41: #{tpu_custom_call.1} parent=35 // pred_check
          %p720 = pneg %p135
        $region42: #{tpu_custom_call.1} parent=35 // pred_check_branch
          %722 = sbr.rel (%p720) target = $region44
        $region43: #{tpu_custom_call.1} parent=35 // pred_region
          %s723 = smul.u32 16, %s23
          %s725 = ssub.s32 2048, 2048
          %726 = vsyncadd %s711, %s725
          %s727 = smul.addr %s723, 128
          %s728 = scalar_lea.hbm %s4, %s727
          %s729 = sshll.u32 %s714, 4
          %s730 = int_to_ptr.vmem [resolvable:$true] %s729
          %735 = dma.vmem_to_hbm [thread:$0]  %s730, 2048, %s728, %s711, 128, 128, 8
        $region44: #{tpu_custom_call.1} parent=35 // pred_fallthru
          _
        // Predicated region
        $region45: #{tpu_custom_call.1} parent=35 // pred_check
          %p736 = pneg %p161
        $region46: #{tpu_custom_call.1} parent=35 // pred_check_branch
          %738 = sbr.rel (%p736) target = $region48
        $region47: #{tpu_custom_call.1} parent=35 // pred_region
          %s739 = smul.u32 16, %s23
        $region48: #{tpu_custom_call.1} parent=35 // pred_fallthru
          _
      $region36: #{tpu_custom_call.1} parent=5 // pred_fallthru
        _
      %p740 = scmp.le.s32.totalorder 2, %s18
      // Predicated region
      $region49: #{tpu_custom_call.1} parent=5 // pred_check
        %p741 = pneg %p740
      $region50: #{tpu_custom_call.1} parent=5 // pred_check_branch
        %743 = sbr.rel (%p741) target = $region52
      $region51: #{tpu_custom_call.1} parent=5 // pred_region
        %s744 = ssub.s32 %s18, 2
        // Predicated region
        $region53: #{tpu_custom_call.1} parent=51 // pred_check
          %p745 = pneg %p141
        $region54: #{tpu_custom_call.1} parent=51 // pred_check_branch
          %747 = sbr.rel (%p745) target = $region56
        $region55: #{tpu_custom_call.1} parent=51 // pred_region
          %s748 = sand.u32 %s126, 1
          %s749 = scalar_lea.sflag [#allocation4], %s748
          %s750 = sand.u32 %s126, 1
          %s751 = smul.addr %s750, 128
          %s752 = scalar_lea.vmem [#allocation5], %s751
          %753 = dma.done %s749, 2048
        $region56: #{tpu_custom_call.1} parent=51 // pred_fallthru
          _
        // Predicated region
        $region57: #{tpu_custom_call.1} parent=51 // pred_check
          %p754 = pneg %p167
        $region58: #{tpu_custom_call.1} parent=51 // pred_check_branch
          %756 = sbr.rel (%p754) target = $region60
        $region59: #{tpu_custom_call.1} parent=51 // pred_region
          %s757 = smul.u32 16, %s24
          %p758 = scmp.lt.s32.totalorder %s757, 31
          %s759 = scalar_select %p758, %s757, 31
          %s760 = smul.addr %s759, 8
          %s761 = scalar_lea.vmem %s5, %s760
        $region60: #{tpu_custom_call.1} parent=51 // pred_fallthru
          _
      $region52: #{tpu_custom_call.1} parent=5 // pred_fallthru
        _
    $region6: #{tpu_custom_call.1} parent=1 // loop_footer
      %s22 = sadd.s32 1, %s18
    $region7: #{tpu_custom_call.1} parent=1 // loop_footer_branch
      %17 = sbr.rel target = $region3
    $region8: #{tpu_custom_call.1} parent=1 // loop_exit
      _
    %762 = vsyncpa [#allocation3], 1
    %s763 = scalar_lea.sflag [#allocation3], 1
    %764 = vsyncpa %s763, 1
    %765 = vsyncpa [#allocation4], 1
    %s766 = scalar_lea.sflag [#allocation4], 1
    %767 = vsyncpa %s766, 1

</llo_original>
